<compile_context>
chip_gen: v6e
topology: v6e:2x2x1
jax: 0.10.0
libtpu: 0.0.40
codegen_flags: <defaults>
</compile_context>

<pallas_src>
import jax
import jax.numpy as jnp
from jax import lax
from jax.experimental import pallas as pl
from jax.experimental.pallas import tpu as pltpu

# Geometry implied by the module: (3,8) valid conv on (N,1,7,12) -> (N,4,5,5) -> 100 -> 1.
CI, CO = 1, 4
KH, KW = 3, 8
IH, IW = 7, 12
OH, OW = IH - KH + 1, IW - KW + 1          # 5, 5
FC_IN, FC_OUT = OH * OW * CO, 1            # 100, 1
F_IN = CI * IH * IW                        # 84 flattened input features


def _round_up(x, m):
    return ((x + m - 1) // m) * m


def _binarize(w):
    """XNOR-style binarization: per-output alpha = mean|W|, Wb = alpha * sign(W)."""
    # TODO(synk): the exact `error` tensor returned by util.BinConv2D/BinLinear is not
    # available; we return the mean squared binarization error ||W - Wb||^2 / numel.
    axes = tuple(range(1, w.ndim))
    alpha = jnp.mean(jnp.abs(w), axis=axes, keepdims=True)
    wb = alpha * jnp.sign(w)                 # torch.sign(0) == 0 -> jnp.sign matches
    err = jnp.mean(jnp.square(w - wb))
    return wb, err


def _fold_affine(wb_conv, conv_b, wb_fc, fc_b):
    """Collapse conv1 -> view(-1,100) -> fc1 (all linear) into out = x_flat @ w_eff + b_eff.

    conv_out[o,oh,ow] = sum_{i,j} x[oh+i, ow+j] * wb_conv[o,0,i,j] + conv_b[o]
    fc_out            = sum_{o,oh,ow} wb_fc[0, o*25+oh*5+ow] * conv_out[o,oh,ow] + fc_b[0]
    """
    fc_w3 = wb_fc.reshape(CO, OH, OW)                      # NCHW-flatten order of view()
    w_eff = jnp.zeros((IH, IW), jnp.float32)
    for oh in range(OH):                                   # 25 tiny trace-time iterations
        for ow in range(OW):
            tap = jnp.einsum("o,oij->ij", fc_w3[:, oh, ow], wb_conv[:, 0])   # (KH, KW)
            w_eff = w_eff.at[oh:oh + KH, ow:ow + KW].add(tap)
    b_eff = fc_b[0] + jnp.sum(fc_w3 * conv_b[:, None, None])
    return w_eff.reshape(F_IN), b_eff


def _affine_kernel(x_ref, w_ref, b_ref, out_ref):
    """x:(TN,84) VMEM   w_eff:(1,84) VMEM   b_eff:(1,) SMEM   out:(1,TN) VMEM."""
    prod = x_ref[...] * w_ref[...]                 # VPU multiply, w broadcast over sublanes
    y = jnp.sum(prod, axis=1)                      # XLU lane-reduce -> (TN,)
    out_ref[...] = (y + b_ref[0])[None, :]         # lane-dense (1, TN) store


def net_forward(params, x):
    """Mirrors Net.forward: (conv1 -> view(-1, 100) -> fc1) -> (out, error1, error2)."""
    conv_w, conv_b, fc_w, fc_b = params
    n = x.shape[0]

    # Activation-independent work hoisted out of the kernel.
    wb_conv, error1 = _binarize(conv_w)                    # (4, 1, 3, 8)
    wb_fc, error2 = _binarize(fc_w)                        # (1, 100)
    w_eff, b_eff = _fold_affine(wb_conv, conv_b, wb_fc, fc_b)   # (84,), ()

    x_flat = x.reshape(n, F_IN).astype(jnp.float32)        # lane-dense feature rows

    # Batch tiling: 512-row tiles (HBM-roofline sweet spot); small batches get a single
    # sublane-aligned tile.  Padded rows are zeros and are sliced away below.
    tn = min(512, _round_up(max(n, 1), 8))
    n_pad = _round_up(n, tn)
    if n_pad != n:
        x_flat = jnp.pad(x_flat, ((0, n_pad - n), (0, 0)))
    grid = (n_pad // tn,)
    # TODO(synk): for batches just above a tile multiple, a ragged last tile (instead of
    # zero-padding to a full tile) would avoid up to one tile of wasted HBM traffic.

    out_row = pl.pallas_call(
        _affine_kernel,
        out_shape=jax.ShapeDtypeStruct((1, n_pad), jnp.float32),
        grid=grid,
        in_specs=[
            pl.BlockSpec((tn, F_IN), lambda i: (i, 0)),            # x tile   (TN, 84)
            pl.BlockSpec((1, F_IN), lambda i: (0, 0)),             # w_eff    (1, 84), resident
            pl.BlockSpec(memory_space=pltpu.MemorySpace.SMEM),     # b_eff    (1,) scalar
        ],
        out_specs=pl.BlockSpec((1, tn), lambda i: (0, i)),         # lane-dense logits row
        compiler_params=pltpu.CompilerParams(dimension_semantics=("parallel",)),
        cost_estimate=pl.CostEstimate(
            flops=2 * F_IN * n_pad,
            transcendentals=0,
            bytes_accessed=4 * (F_IN + 1) * n_pad),
    )(x_flat, w_eff.reshape(1, F_IN), b_eff.reshape(1))

    out = out_row.reshape(n_pad, 1)[:n]                    # back to (N, 1) logits
    return out, error1, error2


def _reference_forward(params, x):
    """Plain-JAX reference (XLA conv + matmul) for correctness validation."""
    conv_w, conv_b, fc_w, fc_b = params
    wb_c, e1 = _binarize(conv_w)
    wb_f, e2 = _binarize(fc_w)
    y = lax.conv_general_dilated(x, wb_c, (1, 1), "VALID",
                                 dimension_numbers=("NCHW", "OIHW", "NCHW"))
    y = y + conv_b[None, :, None, None]
    y = y.reshape(x.shape[0], -1)                          # NCHW flatten == view(-1, 100)
    out = y @ wb_f.T + fc_b[None, :]
    return out, e1, e2


def init_params(key):
    k1, k2, k3, k4 = jax.random.split(key, 4)
    bc = 1.0 / jnp.sqrt(float(CI * KH * KW))
    conv_w = jax.random.uniform(k1, (CO, CI, KH, KW), jnp.float32, -bc, bc)
    conv_b = jax.random.uniform(k2, (CO,), jnp.float32, -bc, bc)
    bl = 1.0 / jnp.sqrt(float(FC_IN))
    fc_w = jax.random.uniform(k3, (FC_OUT, FC_IN), jnp.float32, -bl, bl)
    fc_b = jax.random.uniform(k4, (FC_OUT,), jnp.float32, -bl, bl)
    return conv_w, conv_b, fc_w, fc_b


if __name__ == "__main__":
    key = jax.random.PRNGKey(0)
    pkey, xkey = jax.random.split(key)
    params = init_params(pkey)
    # Input shape implied by the module: (3,8) valid conv -> (5,5) spatial, 4 channels
    # => 25*4 = 100 features for fc1, so x is (N, 1, 7, 12).
    x = jax.random.normal(xkey, (2, CI, IH, IW), jnp.float32)

    out, error1, error2 = jax.jit(net_forward)(params, x)
    jax.block_until_ready((out, error1, error2))

    ref_out, ref_e1, ref_e2 = _reference_forward(params, x)
    assert out.shape == (2, FC_OUT)
    assert error1.shape == () and error2.shape == ()
    assert jnp.allclose(out, ref_out, atol=1e-4, rtol=1e-4)
    assert jnp.allclose(error1, ref_e1, atol=1e-6)
    assert jnp.allclose(error2, ref_e2, atol=1e-6)
    print("KERNEL_OK")
</pallas_src>

<mosaic_0001>
module attributes {stable_mosaic.version = 11 : i64} {
  func.func @_affine_kernel(%arg0: i32, %arg1: memref<8x84xf32, #tpu.memory_space<vmem>>, %arg2: memref<1x84xf32, #tpu.memory_space<vmem>>, %arg3: memref<1xf32, #tpu.memory_space<smem>>, %arg4: memref<1x8xf32, #tpu.memory_space<vmem>>) attributes {dimension_semantics = [#tpu.dimension_semantics<parallel>], iteration_bounds = array<i64: 1>, scalar_prefetch = 0 : i64, scratch_operands = 0 : i64, tpu.core_type = #tpu.core_type<tc>, window_params = [{transform_indices = @transform_0, window_bounds = array<i64: 8, 84>}, {pipeline_mode = #tpu.pipeline_mode<synchronous>, transform_indices = @transform_1, window_bounds = array<i64: 1, 84>}, {transform_indices = @transform_2, window_bounds = array<i64: 1>}, {transform_indices = @transform_3, window_bounds = array<i64: 1, 8>}]} {
    %c0 = arith.constant 0 : index
    %c0_0 = arith.constant 0 : index
    %0 = vector.load %arg1[%c0, %c0_0] : memref<8x84xf32, #tpu.memory_space<vmem>>, vector<8x84xf32>
    %c0_1 = arith.constant 0 : index
    %c0_2 = arith.constant 0 : index
    %1 = vector.load %arg2[%c0_1, %c0_2] : memref<1x84xf32, #tpu.memory_space<vmem>>, vector<1x84xf32>
    %2 = vector.broadcast %1 : vector<1x84xf32> to vector<8x84xf32>
    %3 = arith.mulf %0, %2 : vector<8x84xf32>
    %cst = arith.constant dense<0.000000e+00> : vector<8xf32>
    %4 = vector.multi_reduction <add>, %3, %cst [1] : vector<8x84xf32> to vector<8xf32>
    %c0_3 = arith.constant 0 : index
    %5 = memref.load %arg3[%c0_3] : memref<1xf32, #tpu.memory_space<smem>>
    %6 = vector.broadcast %5 : f32 to vector<8xf32>
    %7 = arith.addf %4, %6 : vector<8xf32>
    %8 = vector.shape_cast %7 : vector<8xf32> to vector<1x8xf32>
    %c0_4 = arith.constant 0 : index
    %c0_5 = arith.constant 0 : index
    %9 = vector.load %arg4[%c0_4, %c0_5] : memref<1x8xf32, #tpu.memory_space<vmem>>, vector<1x8xf32>
    tpu.vector_store %arg4[%c0_4, %c0_5], %8 {strides = array<i32>} : memref<1x8xf32, #tpu.memory_space<vmem>>, vector<1x8xf32>,
    return
  }
  func.func @transform_0(%arg0: i32) -> (i32, i32) {
    %c0_i32 = arith.constant 0 : i32
    %c0_i32_0 = arith.constant 0 : i32
    return %arg0, %c0_i32 : i32, i32
  }
  func.func @transform_1(%arg0: i32) -> (i32, i32) {
    %c0_i32 = arith.constant 0 : i32
    %c0_i32_0 = arith.constant 0 : i32
    %c0_i32_1 = arith.constant 0 : i32
    return %c0_i32, %c0_i32_0 : i32, i32
  }
  func.func @transform_2(%arg0: i32) -> i32 {
    %c0_i32 = arith.constant 0 : i32
    %c0_i32_0 = arith.constant 0 : i32
    return %c0_i32 : i32
  }
  func.func @transform_3(%arg0: i32) -> (i32, i32) {
    %c0_i32 = arith.constant 0 : i32
    %c0_i32_0 = arith.constant 0 : i32
    return %c0_i32, %arg0 : i32, i32
  }
}

</mosaic_0001>

<llo_original>
// kernel: net_forward.1
$region0: #{net_forward.1}
  #allocation0 [shape = 'u32[]', space=smem, size = 0x4, offset = 0x4, fixed_abs, tag = 'smem constant byte address 0x4 - core index']
  #allocation1 [shape = 'u32[144,128]{1,0:T(1,128)}', space=vmem, size = 0x12000, scoped, tag = 'internal scratch']
  #allocation2 [shape = 'f32[1]{0:T(128)S(6)}', space=smem, size = 0x200, scoped, tag = 'scoped memory for net_forward.1']
  %s0 = inlined_call_operand.vmem [shape: f32[8,84], index: 0, kind: input, shape index: {}]
  %s1 = inlined_call_operand.vmem [shape: f32[1,84], index: 1, kind: input, shape index: {}]
  %s2 = inlined_call_operand.<no memory space> [shape: f32[1], index: 2, kind: input, shape index: {}]
  %s3 = inlined_call_operand.vmem [shape: f32[1,8], index: 3, kind: output, shape index: {}]
  %s4 = sld [smem:[#allocation0]]
  $region22: #{net_forward.1} parent=0
    _
  %s6 = ssub.s32 1, %s4
  %s7 = scalar_select 0, %s6, %s4
  %8 = sst [smem:[#allocation2]] %s2
  // Predicated region
  $region2: #{net_forward.1} parent=0 // pred_check
    _
  $region3: #{net_forward.1} parent=0 // pred_check_branch
    %10 = sbr.rel (0) target = $region5
  $region4: #{net_forward.1} parent=0 // pred_region
    _
  $region5: #{net_forward.1} parent=0 // pred_fallthru
    _
  // Predicated region
  $region6: #{net_forward.1} parent=0 // pred_check
    _
  $region7: #{net_forward.1} parent=0 // pred_check_branch
    %12 = sbr.rel (0) target = $region9
  $region8: #{net_forward.1} parent=0 // pred_region
    _
  $region9: #{net_forward.1} parent=0 // pred_fallthru
    _
  // Predicated region
  $region10: #{net_forward.1} parent=0 // pred_check
    _
  $region11: #{net_forward.1} parent=0 // pred_check_branch
    %14 = sbr.rel (0) target = $region13
  $region12: #{net_forward.1} parent=0 // pred_region
    _
  $region13: #{net_forward.1} parent=0 // pred_fallthru
    _
  %v15 = vld [vmem:[%s0] sm:$0xff]
  %v16 = vld [vmem:[%s1] sm:$0x1]
  %v18 = vlaneseq
  %v19 = vshrl.u32 %v18, 7
  %v20 = vsub.s32 0, %v19
  %v21 = vrot.slane %v16, %v20
  %v23 = vmul.f32 %v15, %v21
  %vm24 = vcmask 687104
  %v25 = vsel %vm24, %v23, 0.0
  %26 = vadd.xlane.f32.xlu0 %v25
  %v27 = vpop.xlane.xlu0 %26
  %s28 = sld [smem:[#allocation2]]
  %v29 = vstv %s28
  %v30 = vadd.f32 %v27, %v29
  %v32 = vlaneseq
  %v33 = vand.u32 %v32, 127
  %v34 = vlaneseq
  %v35 = vshrl.u32 %v34, 7
  %v36 = vsub.s32 %v33, %v35
  %v37 = vrot.slane %v30, %v36
  %vm39 = vcmask 57344
  %40 = vst.msk [vmem:[%s3] sm:$0x1] %vm39, %v37
  // Predicated region
  $region14: #{net_forward.1} parent=0 // pred_check
    _
  $region15: #{net_forward.1} parent=0 // pred_check_branch
    %42 = sbr.rel (0) target = $region17
  $region16: #{net_forward.1} parent=0 // pred_region
    _
  $region17: #{net_forward.1} parent=0 // pred_fallthru
    _
  // Predicated region
  $region18: #{net_forward.1} parent=0 // pred_check
    _
  $region19: #{net_forward.1} parent=0 // pred_check_branch
    %44 = sbr.rel (0) target = $region21
  $region20: #{net_forward.1} parent=0 // pred_region
    _
  $region21: #{net_forward.1} parent=0 // pred_fallthru
    _

</llo_original>
